<compile_context>
chip_gen: v7x
topology: tpu7x:2x2x1
jax: 0.10.0
libtpu: 0.0.40
codegen_flags: <defaults>
</compile_context>

<pallas_src>
import functools

import jax
import jax.numpy as jnp
from jax.experimental import pallas as pl
from jax.experimental.pallas import tpu as pltpu


def _ffn_kernel(stages, x_ref, w_ref, b_ref, o_ref):
    """Fused Fourier encoding + tanh-MLP for one feature-major batch tile.

    stages : static tuple of (row_start, n_out, n_in, act) into the slabs,
             act in {"sin", "tanh", None}; stage 0 is the Fourier encoding
             with its phase folded into the bias rows.
    x_ref  : (d_in, tile_n)        batch on the lane axis
    w_ref  : (slab_rows, max_in)   packed weights (row blocks 8-aligned)
    b_ref  : (slab_rows, 1)        packed biases / phases
    o_ref  : (d_out, tile_n)
    """
    W = w_ref[...]                  # one load of the (tiny) parameter slab
    bcol = b_ref[...]
    h = x_ref[...]                  # (d_in, tile_n), already f32

    for row0, n_out, n_in, act in stages:
        w = W[row0:row0 + n_out, :n_in]          # static, sublane-aligned slice
        b = bcol[row0:row0 + n_out, :]
        h = jnp.dot(w, h, preferred_element_type=jnp.float32) + b
        if act == "sin":            # Fourier encoding: sin half + cos half via phase
            h = jnp.sin(h)
        elif act == "tanh":         # hidden layers
            h = jnp.tanh(h)
        # act is None for the final linear layer

    o_ref[...] = h.astype(o_ref.dtype)


def fourier_feature_network_forward(x, B, weights, biases, *, tile_n=2048,
                                    feature_major_output=False):
    """x: [N, input_dim]; B: [input_dim, encoding_dim//2];
    weights[i]: [in_i, out_i]; biases[i]: [1, out_i] (PyTorch x @ W layout)."""
    N, d_in = x.shape
    d_out = weights[-1].shape[1]
    num_layers = len(weights)
    enc_half = B.shape[1]
    enc = 2 * enc_half

    # --- batch tiling: lane-dense tiles; keep >= 4 grid steps when N allows
    # --- so each v7x TensorCore gets >= 2 pipelined steps.
    min_steps = 4
    step_cap = ((N + min_steps - 1) // min_steps + 127) // 128 * 128
    tile_n = max(128, (min(tile_n, max(128, step_cap)) // 128) * 128)
    n_pad = pl.cdiv(N, tile_n) * tile_n
    grid = (n_pad // tile_n,)

    # Feature-major input, padded to a tile multiple (pad fuses with transpose).
    x_t = jnp.pad(x.T, ((0, 0), (0, n_pad - N)))

    # --- pack ALL parameters into one weight slab + one bias column ---------
    # Stage 0 (encoding): sin(W0 @ x + phase) with W0 = [B, B]^T and
    # phase = [0]*enc_half + [pi/2]*enc_half, since cos(z) = sin(z + pi/2).
    stage_w = [jnp.concatenate([B, B], axis=1).T.astype(jnp.float32)]
    stage_b = [jnp.concatenate(
        [jnp.zeros((enc_half, 1), jnp.float32),
         jnp.full((enc_half, 1), jnp.pi / 2, jnp.float32)], axis=0)]
    stage_act = ["sin"]
    for li, (w, b) in enumerate(zip(weights, biases)):
        stage_w.append(w.T.astype(jnp.float32))            # (out_i, in_i)
        stage_b.append(b.reshape(-1, 1).astype(jnp.float32))
        stage_act.append("tanh" if li < num_layers - 1 else None)

    max_in = max(w.shape[1] for w in stage_w)
    stages, w_blocks, b_blocks, row = [], [], [], 0
    for w, b, act in zip(stage_w, stage_b, stage_act):
        n_out, n_in = w.shape
        stages.append((row, n_out, n_in, act))
        n_out_pad = ((n_out + 7) // 8) * 8                  # 8-aligned row blocks
        w_blocks.append(jnp.pad(w, ((0, n_out_pad - n_out), (0, max_in - n_in))))
        b_blocks.append(jnp.pad(b, ((0, n_out_pad - n_out), (0, 0))))
        row += n_out_pad
    w_slab = jnp.concatenate(w_blocks, axis=0)              # (slab_rows, max_in)
    b_slab = jnp.concatenate(b_blocks, axis=0)              # (slab_rows, 1)

    kernel = functools.partial(_ffn_kernel, tuple(stages))

    in_specs = [
        pl.BlockSpec((d_in, tile_n), lambda i: (0, i)),     # batch-tiled x^T
        pl.BlockSpec(w_slab.shape, lambda i: (0, 0)),       # whole weight slab
        pl.BlockSpec(b_slab.shape, lambda i: (0, 0)),       # whole bias column
    ]
    out_spec = pl.BlockSpec((d_out, tile_n), lambda i: (0, i))

    flops = n_pad * sum(2 * n_out * n_in for (_, n_out, n_in, _) in stages)
    transcendentals = n_pad * (enc + sum(w.shape[1] for w in weights[:-1]))
    bytes_accessed = 4 * (n_pad * (d_in + d_out) + w_slab.size + b_slab.size)

    out_t = pl.pallas_call(
        kernel,
        out_shape=jax.ShapeDtypeStruct((d_out, n_pad), x.dtype),
        grid=grid,
        in_specs=in_specs,
        out_specs=out_spec,
        compiler_params=pltpu.CompilerParams(
            dimension_semantics=("parallel",)),
        cost_estimate=pl.CostEstimate(
            flops=int(flops),
            transcendentals=int(transcendentals),
            bytes_accessed=int(bytes_accessed)),
    )(x_t, w_slab, b_slab)

    if feature_major_output:
        return out_t[:, :N]          # (d_out, N): skips the final HBM transpose
    return out_t[:, :N].T            # (N, d_out): matches the PyTorch module


def reference_forward(x, B, weights, biases):
    proj = x @ B
    h = jnp.concatenate([jnp.sin(proj), jnp.cos(proj)], axis=1)
    for i, (w, b) in enumerate(zip(weights, biases)):
        h = h @ w + b
        if i < len(weights) - 1:
            h = jnp.tanh(h)
    return h


if __name__ == "__main__":
    # Module hyper-parameters (small but representative).
    input_dim = 4
    encoding_dim = 32          # Fourier encoding width (sin half + cos half)
    hidden_layers = [32, 32]
    output_dim = 8
    sigma = 1.0
    N = 1000                   # ragged batch; tile sizing yields 4 grid steps

    key = jax.random.PRNGKey(0)
    k_x, k_B, k_layers = jax.random.split(key, 3)

    x = jax.random.normal(k_x, (N, input_dim), dtype=jnp.float32)

    # FourierEncoding.B : normal(0,1) * sigma, shape (input_dim, encoding_dim // 2)
    B = jax.random.normal(k_B, (input_dim, encoding_dim // 2),
                          dtype=jnp.float32) * sigma

    # FNN(encoding_dim -> hidden_layers -> output_dim), deterministic init.
    layer_sizes = [encoding_dim] + list(hidden_layers) + [output_dim]
    weights, biases = [], []
    for li, (fan_in, fan_out) in enumerate(zip(layer_sizes[:-1], layer_sizes[1:])):
        kw, kb = jax.random.split(jax.random.fold_in(k_layers, li))
        bound = 1.0 / jnp.sqrt(fan_in)
        weights.append(jax.random.uniform(kw, (fan_in, fan_out),
                                          jnp.float32, -bound, bound))
        biases.append(jax.random.uniform(kb, (1, fan_out),
                                         jnp.float32, -bound, bound))

    out = fourier_feature_network_forward(x, B, weights, biases)
    out = jax.block_until_ready(out)

    ref = reference_forward(x, B, weights, biases)
    assert out.shape == (N, output_dim)
    assert jnp.allclose(out, ref, atol=1e-4, rtol=1e-4)

    print("KERNEL_OK")
</pallas_src>

<mosaic_0001>
module attributes {stable_mosaic.version = 11 : i64} {
  func.func @_ffn_kernel(%arg0: i32, %arg1: memref<4x256xf32, #tpu.memory_space<vmem>>, %arg2: memref<104x32xf32, #tpu.memory_space<vmem>>, %arg3: memref<104x1xf32, #tpu.memory_space<vmem>>, %arg4: memref<8x256xf32, #tpu.memory_space<vmem>>) attributes {dimension_semantics = [#tpu.dimension_semantics<parallel>], iteration_bounds = array<i64: 4>, scalar_prefetch = 0 : i64, scratch_operands = 0 : i64, tpu.core_type = #tpu.core_type<tc>, window_params = [{transform_indices = @transform_0, window_bounds = array<i64: 4, 256>}, {pipeline_mode = #tpu.pipeline_mode<synchronous>, transform_indices = @transform_1, window_bounds = array<i64: 104, 32>}, {pipeline_mode = #tpu.pipeline_mode<synchronous>, transform_indices = @transform_2, window_bounds = array<i64: 104, 1>}, {transform_indices = @transform_3, window_bounds = array<i64: 8, 256>}]} {
    %c0 = arith.constant 0 : index
    %c0_0 = arith.constant 0 : index
    %0 = vector.load %arg2[%c0, %c0_0] : memref<104x32xf32, #tpu.memory_space<vmem>>, vector<104x32xf32>
    %c0_1 = arith.constant 0 : index
    %c0_2 = arith.constant 0 : index
    %1 = vector.load %arg3[%c0_1, %c0_2] : memref<104x1xf32, #tpu.memory_space<vmem>>, vector<104x1xf32>
    %c0_3 = arith.constant 0 : index
    %c0_4 = arith.constant 0 : index
    %2 = vector.load %arg1[%c0_3, %c0_4] : memref<4x256xf32, #tpu.memory_space<vmem>>, vector<4x256xf32>
    %3 = vector.extract_strided_slice %0 {offsets = [0, 0], sizes = [32, 4], strides = [1, 1]} : vector<104x32xf32> to vector<32x4xf32>
    %4 = vector.extract_strided_slice %1 {offsets = [0, 0], sizes = [32, 1], strides = [1, 1]} : vector<104x1xf32> to vector<32x1xf32>
    %cst = arith.constant dense<0.000000e+00> : vector<32x256xf32>
    %5 = tpu.matmul %3, %2, %cst {dimension_numbers = #tpu.dot_dimension_numbers<[1], [0], [0], [1], [0, 0, 1, 1], [], []>} : vector<32x4xf32>, vector<4x256xf32>, vector<32x256xf32> -> vector<32x256xf32>
    %6 = vector.broadcast %4 : vector<32x1xf32> to vector<32x256xf32>
    %7 = arith.addf %5, %6 : vector<32x256xf32>
    %8 = math.sin %7 : vector<32x256xf32>
    %9 = vector.extract_strided_slice %0 {offsets = [32, 0], sizes = [32, 32], strides = [1, 1]} : vector<104x32xf32> to vector<32x32xf32>
    %10 = vector.extract_strided_slice %1 {offsets = [32, 0], sizes = [32, 1], strides = [1, 1]} : vector<104x1xf32> to vector<32x1xf32>
    %cst_5 = arith.constant dense<0.000000e+00> : vector<32x256xf32>
    %11 = tpu.matmul %9, %8, %cst_5 {dimension_numbers = #tpu.dot_dimension_numbers<[1], [0], [0], [1], [0, 0, 1, 1], [], []>} : vector<32x32xf32>, vector<32x256xf32>, vector<32x256xf32> -> vector<32x256xf32>
    %12 = vector.broadcast %10 : vector<32x1xf32> to vector<32x256xf32>
    %13 = arith.addf %11, %12 : vector<32x256xf32>
    %14 = math.tanh %13 : vector<32x256xf32>
    %15 = vector.extract_strided_slice %0 {offsets = [64, 0], sizes = [32, 32], strides = [1, 1]} : vector<104x32xf32> to vector<32x32xf32>
    %16 = vector.extract_strided_slice %1 {offsets = [64, 0], sizes = [32, 1], strides = [1, 1]} : vector<104x1xf32> to vector<32x1xf32>
    %cst_6 = arith.constant dense<0.000000e+00> : vector<32x256xf32>
    %17 = tpu.matmul %15, %14, %cst_6 {dimension_numbers = #tpu.dot_dimension_numbers<[1], [0], [0], [1], [0, 0, 1, 1], [], []>} : vector<32x32xf32>, vector<32x256xf32>, vector<32x256xf32> -> vector<32x256xf32>
    %18 = vector.broadcast %16 : vector<32x1xf32> to vector<32x256xf32>
    %19 = arith.addf %17, %18 : vector<32x256xf32>
    %20 = math.tanh %19 : vector<32x256xf32>
    %21 = vector.extract_strided_slice %0 {offsets = [96, 0], sizes = [8, 32], strides = [1, 1]} : vector<104x32xf32> to vector<8x32xf32>
    %22 = vector.extract_strided_slice %1 {offsets = [96, 0], sizes = [8, 1], strides = [1, 1]} : vector<104x1xf32> to vector<8x1xf32>
    %cst_7 = arith.constant dense<0.000000e+00> : vector<8x256xf32>
    %23 = tpu.matmul %21, %20, %cst_7 {dimension_numbers = #tpu.dot_dimension_numbers<[1], [0], [0], [1], [0, 0, 1, 1], [], []>} : vector<8x32xf32>, vector<32x256xf32>, vector<8x256xf32> -> vector<8x256xf32>
    %24 = vector.broadcast %22 : vector<8x1xf32> to vector<8x256xf32>
    %25 = arith.addf %23, %24 : vector<8x256xf32>
    %c0_8 = arith.constant 0 : index
    %c0_9 = arith.constant 0 : index
    %26 = vector.load %arg4[%c0_8, %c0_9] : memref<8x256xf32, #tpu.memory_space<vmem>>, vector<8x256xf32>
    tpu.vector_store %arg4[%c0_8, %c0_9], %25 {strides = array<i32>} : memref<8x256xf32, #tpu.memory_space<vmem>>, vector<8x256xf32>,
    return
  }
  func.func @transform_0(%arg0: i32) -> (i32, i32) {
    %c0_i32 = arith.constant 0 : i32
    %c0_i32_0 = arith.constant 0 : i32
    return %c0_i32, %arg0 : i32, i32
  }
  func.func @transform_1(%arg0: i32) -> (i32, i32) {
    %c0_i32 = arith.constant 0 : i32
    %c0_i32_0 = arith.constant 0 : i32
    %c0_i32_1 = arith.constant 0 : i32
    return %c0_i32, %c0_i32_0 : i32, i32
  }
  func.func @transform_2(%arg0: i32) -> (i32, i32) {
    %c0_i32 = arith.constant 0 : i32
    %c0_i32_0 = arith.constant 0 : i32
    %c0_i32_1 = arith.constant 0 : i32
    return %c0_i32, %c0_i32_0 : i32, i32
  }
  func.func @transform_3(%arg0: i32) -> (i32, i32) {
    %c0_i32 = arith.constant 0 : i32
    %c0_i32_0 = arith.constant 0 : i32
    return %c0_i32, %arg0 : i32, i32
  }
}

</mosaic_0001>

<llo_original>
// kernel: tpu_custom_call.1
$region0: #{tpu_custom_call.1}
  #allocation0 [shape = 'u32[]', space=smem, size = 0x4, offset = 0x4, fixed_abs, tag = 'smem constant byte address 0x4 - core index']
  #allocation1 [shape = 'u32[144,128]{1,0:T(1,128)}', space=vmem, size = 0x12000, scoped, tag = 'internal scratch']
  %s0 = inlined_call_operand.vmem [shape: f32[4,1024], index: 0, kind: input, shape index: {}]
  %s1 = inlined_call_operand.vmem [shape: f32[104,32], index: 1, kind: input, shape index: {}]
  %s2 = inlined_call_operand.vmem [shape: f32[104,1], index: 2, kind: input, shape index: {}]
  %s3 = inlined_call_operand.hbm [shape: f32[8,1024], index: 3, kind: output, shape index: {}]
  %s4 = sld [smem:[#allocation0]]
  $region45: #{tpu_custom_call.1} parent=0
    _
  %s6 = ssub.s32 1, %s4
  %s7 = scalar_select 0, %s6, %s4
  $region1: #{tpu_custom_call.1} parent=0
    #allocation2 [shape = 'u8[16384]{0}', space=vmem, size = 0x4000, scoped, tag = 'output window, operand 0']
    #allocation3 [shape = 's32[2]{0}', space=sflag, size = 0x8, scoped, tag = 'scoped memory for tpu_custom_call.1']
    %8 = vsyncpa [#allocation3], 0
    %s9 = scalar_lea.sflag [#allocation3], 1
    %10 = vsyncpa %s9, 0
    loop: start=0, step=1, limit=6
    $region2: #{tpu_custom_call.1} parent=1 // loop_pre_header
      _
    $region3: #{tpu_custom_call.1} parent=1 // loop_header
      %s12 = sphi 0, %s16
      %p13 = scmp.ge.s32.totalorder %s12, 6
      %s22 = sphi 0, %s24
      %s25 = sphi 0, %s22
      %s26 = sphi 0, %s25
      %s42 = sphi 0, %s26
      %s46 = sphi 0, %s46
      %s48 = sphi 0, %s46
      %s49 = sphi 0, %s48
      %s63 = sphi 0, %s49
      %s67 = sphi 0, %s67
      %s69 = sphi 0, %s67
      %s70 = sphi 0, %s69
      %s84 = sphi 0, %s70
      %s90 = sphi 0, %s92
      %s93 = sphi 0, %s90
      %s94 = sphi 0, %s93
      %s110 = sphi 0, %s94
    $region4: #{tpu_custom_call.1} parent=1 // loop_header_branch
      %15 = sbr.rel (%p13) target = $region8
    $region5: #{tpu_custom_call.1} parent=1 // loop_body
      %s17 = ssub.s32 %s12, 1
      %s18 = ssub.s32 %s12, 2
      %s19 = sadd.s32 %s12, 1
      %s20 = ssub.s32 %s12, %s19
      %p21 = scmp.eq.s32.totalorder %s20, 0
      %s23 = sadd.s32 %s22, 1
      %s24 = scalar_select %p21, %s22, %s23
      %p27 = pneg %p21
      %p28 = scmp.eq.s32.totalorder %s12, 3
      %p29 = por %p27, %p28
      %p30 = scmp.ne.s32.totalorder %s22, %s25
      %p31 = scmp.eq.s32.totalorder %s12, 0
      %p32 = por %p30, %p31
      %p33 = scmp.ne.s32.totalorder %s22, %s25
      %p34 = scmp.eq.s32.totalorder %s17, 3
      %p35 = por %p33, %p34
      %p36 = scmp.ne.s32.totalorder %s25, %s26
      %p37 = scmp.eq.s32.totalorder %s17, 0
      %p38 = por %p36, %p37
      %p39 = scmp.ne.s32.totalorder %s25, %s26
      %p40 = scmp.eq.s32.totalorder %s18, 3
      %p41 = por %p39, %p40
      %p43 = scmp.ne.s32.totalorder %s26, %s42
      %p44 = scmp.eq.s32.totalorder %s18, 0
      %p45 = por %p43, %p44
      %s47 = sadd.s32 %s46, 1
      %p50 = scmp.eq.s32.totalorder %s12, 3
      %p51 = scmp.ne.s32.totalorder %s46, %s48
      %p52 = scmp.eq.s32.totalorder %s12, 0
      %p53 = por %p51, %p52
      %p54 = scmp.ne.s32.totalorder %s46, %s48
      %p55 = scmp.eq.s32.totalorder %s17, 3
      %p56 = por %p54, %p55
      %p57 = scmp.ne.s32.totalorder %s48, %s49
      %p58 = scmp.eq.s32.totalorder %s17, 0
      %p59 = por %p57, %p58
      %p60 = scmp.ne.s32.totalorder %s48, %s49
      %p61 = scmp.eq.s32.totalorder %s18, 3
      %p62 = por %p60, %p61
      %p64 = scmp.ne.s32.totalorder %s49, %s63
      %p65 = scmp.eq.s32.totalorder %s18, 0
      %p66 = por %p64, %p65
      %s68 = sadd.s32 %s67, 1
      %p71 = scmp.eq.s32.totalorder %s12, 3
      %p72 = scmp.ne.s32.totalorder %s67, %s69
      %p73 = scmp.eq.s32.totalorder %s12, 0
      %p74 = por %p72, %p73
      %p75 = scmp.ne.s32.totalorder %s67, %s69
      %p76 = scmp.eq.s32.totalorder %s17, 3
      %p77 = por %p75, %p76
      %p78 = scmp.ne.s32.totalorder %s69, %s70
      %p79 = scmp.eq.s32.totalorder %s17, 0
      %p80 = por %p78, %p79
      %p81 = scmp.ne.s32.totalorder %s69, %s70
      %p82 = scmp.eq.s32.totalorder %s18, 3
      %p83 = por %p81, %p82
      %p85 = scmp.ne.s32.totalorder %s70, %s84
      %p86 = scmp.eq.s32.totalorder %s18, 0
      %p87 = por %p85, %p86
      %s88 = ssub.s32 %s12, %s19
      %p89 = scmp.eq.s32.totalorder %s88, 0
      %s91 = sadd.s32 %s90, 1
      %s92 = scalar_select %p89, %s90, %s91
      %p95 = pneg %p89
      %p96 = scmp.eq.s32.totalorder %s12, 3
      %p97 = por %p95, %p96
      %p98 = scmp.ne.s32.totalorder %s90, %s93
      %p99 = scmp.eq.s32.totalorder %s12, 0
      %p100 = por %p98, %p99
      %p101 = scmp.ne.s32.totalorder %s90, %s93
      %p102 = scmp.eq.s32.totalorder %s17, 3
      %p103 = por %p101, %p102
      %p104 = scmp.ne.s32.totalorder %s93, %s94
      %p105 = scmp.eq.s32.totalorder %s17, 0
      %p106 = por %p104, %p105
      %p107 = scmp.ne.s32.totalorder %s93, %s94
      %p108 = scmp.eq.s32.totalorder %s18, 3
      %p109 = por %p107, %p108
      %p111 = scmp.ne.s32.totalorder %s94, %s110
      %p112 = scmp.eq.s32.totalorder %s18, 0
      %p113 = por %p111, %p112
      %p114 = scmp.le.s32.totalorder 1, %s12
      %p115 = scmp.lt.s32.totalorder %s12, 5
      %p116 = pnand %p114, %p115
      %p117 = pneg %p116
      // Predicated region
      $region9: #{tpu_custom_call.1} parent=5 // pred_check
        _
      $region10: #{tpu_custom_call.1} parent=5 // pred_check_branch
        %119 = sbr.rel (%p116) target = $region12
      $region11: #{tpu_custom_call.1} parent=5 // pred_region
        %s120 = ssub.s32 %s12, 1
        // Predicated region
        $region13: #{tpu_custom_call.1} parent=11 // pred_check
          %p121 = pneg %p59
        $region14: #{tpu_custom_call.1} parent=11 // pred_check_branch
          %123 = sbr.rel (%p121) target = $region16
        $region15: #{tpu_custom_call.1} parent=11 // pred_region
          _
        $region16: #{tpu_custom_call.1} parent=11 // pred_fallthru
          _
        // Predicated region
        $region17: #{tpu_custom_call.1} parent=11 // pred_check
          %p124 = pneg %p80
        $region18: #{tpu_custom_call.1} parent=11 // pred_check_branch
          %126 = sbr.rel (%p124) target = $region20
        $region19: #{tpu_custom_call.1} parent=11 // pred_region
          _
        $region20: #{tpu_custom_call.1} parent=11 // pred_fallthru
          _
      $region12: #{tpu_custom_call.1} parent=5 // pred_fallthru
        _
      %p127 = scmp.lt.s32.totalorder %s12, 4
      // Predicated region
      $region21: #{tpu_custom_call.1} parent=5 // pred_check
        %p128 = pneg %p127
      $region22: #{tpu_custom_call.1} parent=5 // pred_check_branch
        %130 = sbr.rel (%p128) target = $region24
      $region23: #{tpu_custom_call.1} parent=5 // pred_region
        // Predicated region
        $region25: #{tpu_custom_call.1} parent=23 // pred_check
          %p131 = pneg %p32
        $region26: #{tpu_custom_call.1} parent=23 // pred_check_branch
          %133 = sbr.rel (%p131) target = $region28
        $region27: #{tpu_custom_call.1} parent=23 // pred_region
          %s134 = smul.u32 2, %s12
          %p135 = scmp.lt.s32.totalorder %s134, 7
          %s136 = scalar_select %p135, %s134, 7
          %s137 = smul.addr %s136, 4
          %s138 = scalar_lea.vmem %s0, %s137
          %s139 = smul.u32 2, %s12
        $region28: #{tpu_custom_call.1} parent=23 // pred_fallthru
          _
      $region24: #{tpu_custom_call.1} parent=5 // pred_fallthru
        _
      %p140 = scmp.le.s32.totalorder 1, %s12
      %p141 = scmp.lt.s32.totalorder %s12, 5
      %p142 = pnand %p140, %p141
      %p143 = pneg %p142
      // Predicated region
      $region29: #{tpu_custom_call.1} parent=5 // pred_check
        _
      $region30: #{tpu_custom_call.1} parent=5 // pred_check_branch
        %145 = sbr.rel (%p142) target = $region32
      $region31: #{tpu_custom_call.1} parent=5 // pred_region
        %s146 = ssub.s32 %s12, 1
        %s147 = smul.u32 2, %s17
        %p148 = scmp.lt.s32.totalorder %s147, 7
        %s149 = scalar_select %p148, %s147, 7
        %s150 = smul.addr %s149, 4
        %s151 = scalar_lea.vmem %s0, %s150
        %p152 = pneg %p38
        %p153 = pneg %p35
        %p154 = pneg %p59
        %p155 = pneg %p56
        %p156 = pneg %p80
        %p157 = pneg %p77
        %p158 = pneg %p106
        %p159 = pneg %p103
        %s160 = sand.u32 %s93, 1
        %s161 = scalar_lea.sflag [#allocation3], %s160
        %s162 = sand.u32 %s93, 1
        %s163 = smul.addr %s162, 16
        %s164 = scalar_lea.vmem [#allocation2], %s163
        %s165 = smul.u32 2, %s17
        %p166 = scmp.lt.s32.totalorder %s165, 7
        %s167 = scalar_select %p166, %s165, 7
        %s168 = smul.addr %s167, 4
        %s169 = scalar_lea.vmem %s0, %s168
        %s170 = smul.u32 2, %s17
        %s171 = smul.u32 2, %s17
        %v172 = vld [vmem:[%s1] sm:$0xff]
        %v173 = vld [vmem:[%s1 + $0x8] sm:$0xff]
        %v174 = vld [vmem:[%s1 + $0x10] sm:$0xff]
        %v175 = vld [vmem:[%s1 + $0x18] sm:$0xff]
        %v176 = vld [vmem:[%s1 + $0x20] sm:$0xff]
        %v177 = vld [vmem:[%s1 + $0x28] sm:$0xff]
        %v178 = vld [vmem:[%s1 + $0x30] sm:$0xff]
        %v179 = vld [vmem:[%s1 + $0x38] sm:$0xff]
        %v180 = vld [vmem:[%s1 + $0x40] sm:$0xff]
        %v181 = vld [vmem:[%s1 + $0x48] sm:$0xff]
        %v182 = vld [vmem:[%s1 + $0x50] sm:$0xff]
        %v183 = vld [vmem:[%s1 + $0x58] sm:$0xff]
        %v184 = vld [vmem:[%s1 + $0x60] sm:$0xff]
        %v185 = vld [vmem:[%s2] sm:$0xff]
        %v186 = vld [vmem:[%s2 + $0x8] sm:$0xff]
        %v187 = vld [vmem:[%s2 + $0x10] sm:$0xff]
        %v188 = vld [vmem:[%s2 + $0x18] sm:$0xff]
        %v189 = vld [vmem:[%s2 + $0x20] sm:$0xff]
        %v190 = vld [vmem:[%s2 + $0x28] sm:$0xff]
        %v191 = vld [vmem:[%s2 + $0x30] sm:$0xff]
        %v192 = vld [vmem:[%s2 + $0x38] sm:$0xff]
        %v193 = vld [vmem:[%s2 + $0x40] sm:$0xff]
        %v194 = vld [vmem:[%s2 + $0x48] sm:$0xff]
        %v195 = vld [vmem:[%s2 + $0x50] sm:$0xff]
        %v196 = vld [vmem:[%s2 + $0x58] sm:$0xff]
        %v197 = vld [vmem:[%s2 + $0x60] sm:$0xff]
        %v198 = vld [vmem:[%s169] sm:$0xff]
        %200 = vset.pattern.permute.xlu0 0
        %201 = vperm.xlu0 %200, %v185
        %v202 = vpop.permute.xlu0 %201
        %205 = vset.pattern.permute.xlu0 0
        %206 = vperm.xlu0 %205, %v186
        %v207 = vpop.permute.xlu0 %206
        %210 = vset.pattern.permute.xlu0 0
        %211 = vperm.xlu0 %210, %v187
        %v212 = vpop.permute.xlu0 %211
        %215 = vset.pattern.permute.xlu0 0
        %216 = vperm.xlu0 %215, %v188
        %v217 = vpop.permute.xlu0 %216
        %v220 = vcombine.high %v198, %v198
        %vm221 = vcmask 31744
        %v223 = vsel %vm221, %v172, 0
        %v226 = vsel %vm221, %v173, 0
        %v229 = vsel %vm221, %v174, 0
        %v232 = vsel %vm221, %v175, 0
        %vm234 = vcmask 1043456
        %v235 = vsel %vm234, %v198, 0
        %v237 = vsel %vm234, %v220, 0
        %239 = vmatprep.subr.mxu0 %v237
        %240 = vmatpush1.msra.mxu0 %v235
        %241 = vmatprep.subr.mxu0 0.0
        %242 = vmatpush1.msra.mxu0 0.0
        %243 = vmatprep.subr.mxu0 0.0
        %244 = vmatpush1.msra.mxu0 0.0
        %245 = vmatprep.subr.mxu0 0.0
        %246 = vmatpush1.msra.mxu0 0.0
        %247 = vmatprep.subr.mxu0 0.0
        %248 = vmatpush1.msra.mxu0 0.0
        %249 = vmatprep.subr.mxu0 0.0
        %250 = vmatpush1.msra.mxu0 0.0
        %251 = vmatprep.subr.mxu0 0.0
        %252 = vmatpush1.msra.mxu0 0.0
        %253 = vmatprep.subr.mxu0 0.0
        %254 = vmatpush1.msra.mxu0 0.0
        %255 = vmatprep.subr.mxu0 0.0
        %256 = vmatpush1.msra.mxu0 0.0
        %257 = vmatprep.subr.mxu0 0.0
        %258 = vmatpush1.msra.mxu0 0.0
        %259 = vmatprep.subr.mxu0 0.0
        %260 = vmatpush1.msra.mxu0 0.0
        %261 = vmatprep.subr.mxu0 0.0
        %262 = vmatpush1.msra.mxu0 0.0
        %263 = vmatprep.subr.mxu0 0.0
        %264 = vmatpush1.msra.mxu0 0.0
        %265 = vmatprep.subr.mxu0 0.0
        %266 = vmatpush1.msra.mxu0 0.0
        %267 = vmatprep.subr.mxu0 0.0
        %268 = vmatpush1.msra.mxu0 0.0
        %269 = vmatprep.subr.mxu0 0.0
        %270 = vmatpush1.msra.mxu0 0.0
        %271 = vmatprep.subr.mxu0 0.0
        %272 = vmatpush1.msra.mxu0 0.0
        %273 = vmatprep.subr.mxu0 0.0
        %274 = vmatpush1.msra.mxu0 0.0
        %275 = vmatprep.subr.mxu0 0.0
        %276 = vmatpush1.msra.mxu0 0.0
        %277 = vmatprep.subr.mxu0 0.0
        %278 = vmatpush1.msra.mxu0 0.0
        %279 = vmatprep.subr.mxu0 0.0
        %280 = vmatpush1.msra.mxu0 0.0
        %281 = vmatprep.subr.mxu0 0.0
        %282 = vmatpush1.msra.mxu0 0.0
        %283 = vmatprep.subr.mxu0 0.0
        %284 = vmatpush1.msra.mxu0 0.0
        %285 = vmatprep.subr.mxu0 0.0
        %286 = vmatpush1.msra.mxu0 0.0
        %287 = vmatprep.subr.mxu0 0.0
        %288 = vmatpush1.msra.mxu0 0.0
        %289 = vmatprep.subr.mxu0 0.0
        %290 = vmatpush1.msra.mxu0 0.0
        %291 = vmatprep.subr.mxu0 0.0
        %292 = vmatpush1.msra.mxu0 0.0
        %293 = vmatprep.subr.mxu0 0.0
        %294 = vmatpush1.msra.mxu0 0.0
        %295 = vmatprep.subr.mxu0 0.0
        %296 = vmatpush1.msra.mxu0 0.0
        %297 = vmatprep.subr.mxu0 0.0
        %298 = vmatpush1.msra.mxu0 0.0
        %299 = vmatprep.subr.mxu0 0.0
        %300 = vmatpush1.msra.mxu0 0.0
        %301 = vmatprep.subr.mxu0 0.0
        %302 = vmatpush1.msra.mxu0 0.0
        %303 = vmatprep.mubr.f32.mxu0 0.0
        %304 = vmatmul.mubr.f32.gmra.mrb[0].mxu0 %v223
        %v305 = vpop.f32.mrb[0].mxu0
        %v306 = vadd.f32 %v202, %v305
        %v307 = vpop.f32.mrb[0].mxu0
        %v308 = vadd.f32 %v202, %v307
        %309 = vmatprep.mubr.f32.mxu0 0.0
        %310 = vmatmul.mubr.f32.gmra.mrb[0].mxu0 %v226
        %v311 = vpop.f32.mrb[0].mxu0
        %v312 = vadd.f32 %v207, %v311
        %v313 = vpop.f32.mrb[0].mxu0
        %v314 = vadd.f32 %v207, %v313
        %315 = vmatprep.mubr.f32.mxu0 0.0
        %316 = vmatmul.mubr.f32.gmra.mrb[0].mxu0 %v229
        %v317 = vpop.f32.mrb[0].mxu0
        %v318 = vadd.f32 %v212, %v317
        %v319 = vpop.f32.mrb[0].mxu0
        %v320 = vadd.f32 %v212, %v319
        %321 = vmatprep.mubr.f32.mxu0 0.0
        %322 = vmatmul.mubr.f32.gmra.mrb[0].mxu0 %v232
        %v323 = vpop.f32.mrb[0].mxu0
        %v324 = vadd.f32 %v217, %v323
        %v325 = vpop.f32.mrb[0].mxu0
        %v326 = vadd.f32 %v217, %v325
        %327 = vdwg.mxu0
        %v328 = vand.u32 2147483647, %v306
        %vm329 = vcmp.le.f32.partialorder %v328, 0.7853982
        %vm330 = vcmp.lt.s32.totalorder %v306, 0
        %v331 = vand.u32 %v306, 2139095040
        %v332 = vshrl.u32 %v331, 23
        %v333 = vsub.s32 %v332, 127
        %v334 = vand.u32 2147483647, %v306
        %v335 = vand.u32 %v334, 8388607
        %v336 = vor.u32 %v335, 8388608
        %v337 = vsub.s32 0, %v336
        %v338 = vadd.s32 %v333, 1
        %vm339 = vcmp.gt.s32.totalorder %v338, 0
        %v340 = vsel %vm339, %v338, 0
        %v341 = vshrl.u32 %v340, 5
        %v342 = vand.u32 %v340, 31
        %v343 = vsub.s32 32, %v342
        %v344 = vshrl.u32 683565275, %v343
        %v345 = vshll.u32 683565275, %v342
        %v346 = vshrl.u32 2475754826, %v343
        %v347 = vor.u32 %v345, %v346
        %v348 = vshll.u32 2475754826, %v342
        %v349 = vshrl.u32 2131351028, %v343
        %v350 = vor.u32 %v348, %v349
        %v351 = vshll.u32 2131351028, %v342
        %v352 = vshrl.u32 2102212464, %v343
        %v353 = vor.u32 %v351, %v352
        %v354 = vshll.u32 2102212464, %v342
        %v355 = vshrl.u32 920167782, %v343
        %v356 = vor.u32 %v354, %v355
        %v357 = vshll.u32 920167782, %v342
        %v358 = vshrl.u32 1326507024, %v343
        %v359 = vor.u32 %v357, %v358
        %vm360 = vcmp.lt.s32.totalorder %v341, 1
        %vm361 = vcmp.lt.s32.totalorder %v341, 2
        %vm362 = vcmp.lt.s32.totalorder %v341, 3
        %vm363 = vcmp.lt.s32.totalorder %v341, 4
        %v364 = vsel %vm360, %v344, %v347
        %v365 = vsel %vm363, %v353, 2102212464
        %v366 = vsel %vm362, %v350, %v365
        %v367 = vsel %vm361, %v364, %v366
        %v368 = vsel %vm360, %v347, %v350
        %v369 = vsel %vm363, %v356, 920167782
        %v370 = vsel %vm362, %v353, %v369
        %v371 = vsel %vm361, %v368, %v370
        %v372 = vsel %vm360, %v350, %v353
        %v373 = vsel %vm363, %v359, 1326507024
        %v374 = vsel %vm362, %v356, %v373
        %v375 = vsel %vm361, %v372, %v374
        %v376 = vshll.u32 %v336, 8
        %v377 = vmul.u32.u64.compose %v376, %v375
        %v378 = vextract.low.u32 %v377
        %v379 = vextract.high.u32 %v377
        %v380 = vmul.u32.u64.compose %v376, %v371
        %v381 = vextract.low.u32 %v380
        %v382 = vextract.high.u32 %v380
        %v383 = vmul.u32 %v376, %v367
        %v384 = vadd.s32 %v379, %v381
        %vm385 = vc.u32 %v379, %v381
        %v386 = vadd.s32 %v382, 1
        %v387 = vsel %vm385, %v386, %v382
        %v388 = vadd.s32 %v383, %v387
        %v389 = vadd.s32 %v388, 536870912
        %v390 = vshrl.u32 %v389, 30
        %v391 = vshll.u32 %v390, 30
        %v392 = vsub.s32 %v388, %v391
        %vm393 = vcmp.lt.s32.totalorder %v392, 0
        %v394 = vsub.s32 0, %v392
        %v395 = vsel %vm393, %v394, %v392
        %v396 = vclz %v395
        %v397 = vsub.s32 %v396, 2
        %vm398 = vcmp.gt.s32.totalorder 0, %v397
        %v399 = vsel %vm398, 0, %v397
        %v400 = vsub.s32 32, %v399
        %v401 = vshll.u32 %v392, %v399
        %v402 = vshrl.u32 %v384, %v400
        %v403 = vor.u32 %v401, %v402
        %v404 = vsub.s32 4294967266, %v399
        %v405 = vadd.s32 %v404, 127
        %v406 = vshll.u32 %v405, 23
        %v407 = vor.u32 4788187, %v406
        %v408 = vand.u32 2147483647, %v407
        %v410 = vcvt.s32.f32 %v403
        %v411 = vmul.f32 %v410, %v408
        %v412 = vxor.u32 %v411, 2147483648
        %v413 = vsel %vm330, %v412, %v411
        %v414 = vsub.s32 4, %v390
        %v415 = vsel %vm330, %v414, %v390
        %v416 = vsel %vm329, %v306, %v413
        %v417 = vsel %vm329, 0, %v415
        %v418 = vcosq.f32.pop %v416
        %v419 = vsinq.f32.pop %v416
        %vm420 = vweird.f32 %v306
        %v421 = vadd.s32 %v417, 3
        %v422 = vand.u32 %v421, 3
        %vm423 = vcmp.lt.s32.totalorder %v422, 2
        %vm424 = vcmp.eq.s32.totalorder %v422, 0
        %v425 = vxor.u32 %v419, 2147483648
        %v426 = vsel %vm424, %v418, %v425
        %vm427 = vcmp.eq.s32.totalorder %v422, 2
        %v428 = vxor.u32 %v418, 2147483648
        %v429 = vsel %vm427, %v428, %v419
        %v430 = vsel %vm423, %v426, %v429
        %v431 = vsel %vm420, nan, %v430
        %v432 = vand.u32 2147483647, %v308
        %vm433 = vcmp.le.f32.partialorder %v432, 0.7853982
        %vm434 = vcmp.lt.s32.totalorder %v308, 0
        %v435 = vand.u32 %v308, 2139095040
        %v436 = vshrl.u32 %v435, 23
        %v437 = vsub.s32 %v436, 127
        %v438 = vand.u32 2147483647, %v308
        %v439 = vand.u32 %v438, 8388607
        %v440 = vor.u32 %v439, 8388608
        %v441 = vsub.s32 0, %v440
        %v442 = vadd.s32 %v437, 1
        %vm443 = vcmp.gt.s32.totalorder %v442, 0
        %v444 = vsel %vm443, %v442, 0
        %v445 = vshrl.u32 %v444, 5
        %v446 = vand.u32 %v444, 31
        %v447 = vsub.s32 32, %v446
        %v448 = vshrl.u32 683565275, %v447
        %v449 = vshll.u32 683565275, %v446
        %v450 = vshrl.u32 2475754826, %v447
        %v451 = vor.u32 %v449, %v450
        %v452 = vshll.u32 2475754826, %v446
        %v453 = vshrl.u32 2131351028, %v447
        %v454 = vor.u32 %v452, %v453
        %v455 = vshll.u32 2131351028, %v446
        %v456 = vshrl.u32 2102212464, %v447
        %v457 = vor.u32 %v455, %v456
        %v458 = vshll.u32 2102212464, %v446
        %v459 = vshrl.u32 920167782, %v447
        %v460 = vor.u32 %v458, %v459
        %v461 = vshll.u32 920167782, %v446
        %v462 = vshrl.u32 1326507024, %v447
        %v463 = vor.u32 %v461, %v462
        %vm464 = vcmp.lt.s32.totalorder %v445, 1
        %vm465 = vcmp.lt.s32.totalorder %v445, 2
        %vm466 = vcmp.lt.s32.totalorder %v445, 3
        %vm467 = vcmp.lt.s32.totalorder %v445, 4
        %v468 = vsel %vm464, %v448, %v451
        %v469 = vsel %vm467, %v457, 2102212464
        %v470 = vsel %vm466, %v454, %v469
        %v471 = vsel %vm465, %v468, %v470
        %v472 = vsel %vm464, %v451, %v454
        %v473 = vsel %vm467, %v460, 920167782
        %v474 = vsel %vm466, %v457, %v473
        %v475 = vsel %vm465, %v472, %v474
        %v476 = vsel %vm464, %v454, %v457
        %v477 = vsel %vm467, %v463, 1326507024
        %v478 = vsel %vm466, %v460, %v477
        %v479 = vsel %vm465, %v476, %v478
        %v480 = vshll.u32 %v440, 8
        %v481 = vmul.u32.u64.compose %v480, %v479
        %v482 = vextract.low.u32 %v481
        %v483 = vextract.high.u32 %v481
        %v484 = vmul.u32.u64.compose %v480, %v475
        %v485 = vextract.low.u32 %v484
        %v486 = vextract.high.u32 %v484
        %v487 = vmul.u32 %v480, %v471
        %v488 = vadd.s32 %v483, %v485
        %vm489 = vc.u32 %v483, %v485
        %v490 = vadd.s32 %v486, 1
        %v491 = vsel %vm489, %v490, %v486
        %v492 = vadd.s32 %v487, %v491
        %v493 = vadd.s32 %v492, 536870912
        %v494 = vshrl.u32 %v493, 30
        %v495 = vshll.u32 %v494, 30
        %v496 = vsub.s32 %v492, %v495
        %vm497 = vcmp.lt.s32.totalorder %v496, 0
        %v498 = vsub.s32 0, %v496
        %v499 = vsel %vm497, %v498, %v496
        %v500 = vclz %v499
        %v501 = vsub.s32 %v500, 2
        %vm502 = vcmp.gt.s32.totalorder 0, %v501
        %v503 = vsel %vm502, 0, %v501
        %v504 = vsub.s32 32, %v503
        %v505 = vshll.u32 %v496, %v503
        %v506 = vshrl.u32 %v488, %v504
        %v507 = vor.u32 %v505, %v506
        %v508 = vsub.s32 4294967266, %v503
        %v509 = vadd.s32 %v508, 127
        %v510 = vshll.u32 %v509, 23
        %v511 = vor.u32 4788187, %v510
        %v512 = vand.u32 2147483647, %v511
        %v514 = vcvt.s32.f32 %v507
        %v515 = vmul.f32 %v514, %v512
        %v516 = vxor.u32 %v515, 2147483648
        %v517 = vsel %vm434, %v516, %v515
        %v518 = vsub.s32 4, %v494
        %v519 = vsel %vm434, %v518, %v494
        %v520 = vsel %vm433, %v308, %v517
        %v521 = vsel %vm433, 0, %v519
        %v522 = vcosq.f32.pop %v520
        %v523 = vsinq.f32.pop %v520
        %vm524 = vweird.f32 %v308
        %v525 = vadd.s32 %v521, 3
        %v526 = vand.u32 %v525, 3
        %vm527 = vcmp.lt.s32.totalorder %v526, 2
        %vm528 = vcmp.eq.s32.totalorder %v526, 0
        %v529 = vxor.u32 %v523, 2147483648
        %v530 = vsel %vm528, %v522, %v529
        %vm531 = vcmp.eq.s32.totalorder %v526, 2
        %v532 = vxor.u32 %v522, 2147483648
        %v533 = vsel %vm531, %v532, %v523
        %v534 = vsel %vm527, %v530, %v533
        %v535 = vsel %vm524, nan, %v534
        %v536 = vand.u32 2147483647, %v312
        %vm537 = vcmp.le.f32.partialorder %v536, 0.7853982
        %vm538 = vcmp.lt.s32.totalorder %v312, 0
        %v539 = vand.u32 %v312, 2139095040
        %v540 = vshrl.u32 %v539, 23
        %v541 = vsub.s32 %v540, 127
        %v542 = vand.u32 2147483647, %v312
        %v543 = vand.u32 %v542, 8388607
        %v544 = vor.u32 %v543, 8388608
        %v545 = vsub.s32 0, %v544
        %v546 = vadd.s32 %v541, 1
        %vm547 = vcmp.gt.s32.totalorder %v546, 0
        %v548 = vsel %vm547, %v546, 0
        %v549 = vshrl.u32 %v548, 5
        %v550 = vand.u32 %v548, 31
        %v551 = vsub.s32 32, %v550
        %v552 = vshrl.u32 683565275, %v551
        %v553 = vshll.u32 683565275, %v550
        %v554 = vshrl.u32 2475754826, %v551
        %v555 = vor.u32 %v553, %v554
        %v556 = vshll.u32 2475754826, %v550
        %v557 = vshrl.u32 2131351028, %v551
        %v558 = vor.u32 %v556, %v557
        %v559 = vshll.u32 2131351028, %v550
        %v560 = vshrl.u32 2102212464, %v551
        %v561 = vor.u32 %v559, %v560
        %v562 = vshll.u32 2102212464, %v550
        %v563 = vshrl.u32 920167782, %v551
        %v564 = vor.u32 %v562, %v563
        %v565 = vshll.u32 920167782, %v550
        %v566 = vshrl.u32 1326507024, %v551
        %v567 = vor.u32 %v565, %v566
        %vm568 = vcmp.lt.s32.totalorder %v549, 1
        %vm569 = vcmp.lt.s32.totalorder %v549, 2
        %vm570 = vcmp.lt.s32.totalorder %v549, 3
        %vm571 = vcmp.lt.s32.totalorder %v549, 4
        %v572 = vsel %vm568, %v552, %v555
        %v573 = vsel %vm571, %v561, 2102212464
        %v574 = vsel %vm570, %v558, %v573
        %v575 = vsel %vm569, %v572, %v574
        %v576 = vsel %vm568, %v555, %v558
        %v577 = vsel %vm571, %v564, 920167782
        %v578 = vsel %vm570, %v561, %v577
        %v579 = vsel %vm569, %v576, %v578
        %v580 = vsel %vm568, %v558, %v561
        %v581 = vsel %vm571, %v567, 1326507024
        %v582 = vsel %vm570, %v564, %v581
        %v583 = vsel %vm569, %v580, %v582
        %v584 = vshll.u32 %v544, 8
        %v585 = vmul.u32.u64.compose %v584, %v583
        %v586 = vextract.low.u32 %v585
        %v587 = vextract.high.u32 %v585
        %v588 = vmul.u32.u64.compose %v584, %v579
        %v589 = vextract.low.u32 %v588
        %v590 = vextract.high.u32 %v588
        %v591 = vmul.u32 %v584, %v575
        %v592 = vadd.s32 %v587, %v589
        %vm593 = vc.u32 %v587, %v589
        %v594 = vadd.s32 %v590, 1
        %v595 = vsel %vm593, %v594, %v590
        %v596 = vadd.s32 %v591, %v595
        %v597 = vadd.s32 %v596, 536870912
        %v598 = vshrl.u32 %v597, 30
        %v599 = vshll.u32 %v598, 30
        %v600 = vsub.s32 %v596, %v599
        %vm601 = vcmp.lt.s32.totalorder %v600, 0
        %v602 = vsub.s32 0, %v600
        %v603 = vsel %vm601, %v602, %v600
        %v604 = vclz %v603
        %v605 = vsub.s32 %v604, 2
        %vm606 = vcmp.gt.s32.totalorder 0, %v605
        %v607 = vsel %vm606, 0, %v605
        %v608 = vsub.s32 32, %v607
        %v609 = vshll.u32 %v600, %v607
        %v610 = vshrl.u32 %v592, %v608
        %v611 = vor.u32 %v609, %v610
        %v612 = vsub.s32 4294967266, %v607
        %v613 = vadd.s32 %v612, 127
        %v614 = vshll.u32 %v613, 23
        %v615 = vor.u32 4788187, %v614
        %v616 = vand.u32 2147483647, %v615
        %v618 = vcvt.s32.f32 %v611
        %v619 = vmul.f32 %v618, %v616
        %v620 = vxor.u32 %v619, 2147483648
        %v621 = vsel %vm538, %v620, %v619
        %v622 = vsub.s32 4, %v598
        %v623 = vsel %vm538, %v622, %v598
        %v624 = vsel %vm537, %v312, %v621
        %v625 = vsel %vm537, 0, %v623
        %v626 = vcosq.f32.pop %v624
        %v627 = vsinq.f32.pop %v624
        %vm628 = vweird.f32 %v312
        %v629 = vadd.s32 %v625, 3
        %v630 = vand.u32 %v629, 3
        %vm631 = vcmp.lt.s32.totalorder %v630, 2
        %vm632 = vcmp.eq.s32.totalorder %v630, 0
        %v633 = vxor.u32 %v627, 2147483648
        %v634 = vsel %vm632, %v626, %v633
        %vm635 = vcmp.eq.s32.totalorder %v630, 2
        %v636 = vxor.u32 %v626, 2147483648
        %v637 = vsel %vm635, %v636, %v627
        %v638 = vsel %vm631, %v634, %v637
        %v639 = vsel %vm628, nan, %v638
        %v640 = vand.u32 2147483647, %v314
        %vm641 = vcmp.le.f32.partialorder %v640, 0.7853982
        %vm642 = vcmp.lt.s32.totalorder %v314, 0
        %v643 = vand.u32 %v314, 2139095040
        %v644 = vshrl.u32 %v643, 23
        %v645 = vsub.s32 %v644, 127
        %v646 = vand.u32 2147483647, %v314
        %v647 = vand.u32 %v646, 8388607
        %v648 = vor.u32 %v647, 8388608
        %v649 = vsub.s32 0, %v648
        %v650 = vadd.s32 %v645, 1
        %vm651 = vcmp.gt.s32.totalorder %v650, 0
        %v652 = vsel %vm651, %v650, 0
        %v653 = vshrl.u32 %v652, 5
        %v654 = vand.u32 %v652, 31
        %v655 = vsub.s32 32, %v654
        %v656 = vshrl.u32 683565275, %v655
        %v657 = vshll.u32 683565275, %v654
        %v658 = vshrl.u32 2475754826, %v655
        %v659 = vor.u32 %v657, %v658
        %v660 = vshll.u32 2475754826, %v654
        %v661 = vshrl.u32 2131351028, %v655
        %v662 = vor.u32 %v660, %v661
        %v663 = vshll.u32 2131351028, %v654
        %v664 = vshrl.u32 2102212464, %v655
        %v665 = vor.u32 %v663, %v664
        %v666 = vshll.u32 2102212464, %v654
        %v667 = vshrl.u32 920167782, %v655
        %v668 = vor.u32 %v666, %v667
        %v669 = vshll.u32 920167782, %v654
        %v670 = vshrl.u32 1326507024, %v655
        %v671 = vor.u32 %v669, %v670
        %vm672 = vcmp.lt.s32.totalorder %v653, 1
        %vm673 = vcmp.lt.s32.totalorder %v653, 2
        %vm674 = vcmp.lt.s32.totalorder %v653, 3
        %vm675 = vcmp.lt.s32.totalorder %v653, 4
        %v676 = vsel %vm672, %v656, %v659
        %v677 = vsel %vm675, %v665, 2102212464
        %v678 = vsel %vm674, %v662, %v677
        %v679 = vsel %vm673, %v676, %v678
        %v680 = vsel %vm672, %v659, %v662
        %v681 = vsel %vm675, %v668, 920167782
        %v682 = vsel %vm674, %v665, %v681
        %v683 = vsel %vm673, %v680, %v682
        %v684 = vsel %vm672, %v662, %v665
        %v685 = vsel %vm675, %v671, 1326507024
        %v686 = vsel %vm674, %v668, %v685
        %v687 = vsel %vm673, %v684, %v686
        %v688 = vshll.u32 %v648, 8
        %v689 = vmul.u32.u64.compose %v688, %v687
        %v690 = vextract.low.u32 %v689
        %v691 = vextract.high.u32 %v689
        %v692 = vmul.u32.u64.compose %v688, %v683
        %v693 = vextract.low.u32 %v692
        %v694 = vextract.high.u32 %v692
        %v695 = vmul.u32 %v688, %v679
        %v696 = vadd.s32 %v691, %v693
        %vm697 = vc.u32 %v691, %v693
        %v698 = vadd.s32 %v694, 1
        %v699 = vsel %vm697, %v698, %v694
        %v700 = vadd.s32 %v695, %v699
        %v701 = vadd.s32 %v700, 536870912
        %v702 = vshrl.u32 %v701, 30
        %v703 = vshll.u32 %v702, 30
        %v704 = vsub.s32 %v700, %v703
        %vm705 = vcmp.lt.s32.totalorder %v704, 0
        %v706 = vsub.s32 0, %v704
        %v707 = vsel %vm705, %v706, %v704
        %v708 = vclz %v707
        %v709 = vsub.s32 %v708, 2
        %vm710 = vcmp.gt.s32.totalorder 0, %v709
        %v711 = vsel %vm710, 0, %v709
        %v712 = vsub.s32 32, %v711
        %v713 = vshll.u32 %v704, %v711
        %v714 = vshrl.u32 %v696, %v712
        %v715 = vor.u32 %v713, %v714
        %v716 = vsub.s32 4294967266, %v711
        %v717 = vadd.s32 %v716, 127
        %v718 = vshll.u32 %v717, 23
        %v719 = vor.u32 4788187, %v718
        %v720 = vand.u32 2147483647, %v719
        %v722 = vcvt.s32.f32 %v715
        %v723 = vmul.f32 %v722, %v720
        %v724 = vxor.u32 %v723, 2147483648
        %v725 = vsel %vm642, %v724, %v723
        %v726 = vsub.s32 4, %v702
        %v727 = vsel %vm642, %v726, %v702
        %v728 = vsel %vm641, %v314, %v725
        %v729 = vsel %vm641, 0, %v727
        %v730 = vcosq.f32.pop %v728
        %v731 = vsinq.f32.pop %v728
        %vm732 = vweird.f32 %v314
        %v733 = vadd.s32 %v729, 3
        %v734 = vand.u32 %v733, 3
        %vm735 = vcmp.lt.s32.totalorder %v734, 2
        %vm736 = vcmp.eq.s32.totalorder %v734, 0
        %v737 = vxor.u32 %v731, 2147483648
        %v738 = vsel %vm736, %v730, %v737
        %vm739 = vcmp.eq.s32.totalorder %v734, 2
        %v740 = vxor.u32 %v730, 2147483648
        %v741 = vsel %vm739, %v740, %v731
        %v742 = vsel %vm735, %v738, %v741
        %v743 = vsel %vm732, nan, %v742
        %v744 = vand.u32 2147483647, %v318
        %vm745 = vcmp.le.f32.partialorder %v744, 0.7853982
        %vm746 = vcmp.lt.s32.totalorder %v318, 0
        %v747 = vand.u32 %v318, 2139095040
        %v748 = vshrl.u32 %v747, 23
        %v749 = vsub.s32 %v748, 127
        %v750 = vand.u32 2147483647, %v318
        %v751 = vand.u32 %v750, 8388607
        %v752 = vor.u32 %v751, 8388608
        %v753 = vsub.s32 0, %v752
        %v754 = vadd.s32 %v749, 1
        %vm755 = vcmp.gt.s32.totalorder %v754, 0
        %v756 = vsel %vm755, %v754, 0
        %v757 = vshrl.u32 %v756, 5
        %v758 = vand.u32 %v756, 31
        %v759 = vsub.s32 32, %v758
        %v760 = vshrl.u32 683565275, %v759
        %v761 = vshll.u32 683565275, %v758
        %v762 = vshrl.u32 2475754826, %v759
        %v763 = vor.u32 %v761, %v762
        %v764 = vshll.u32 2475754826, %v758
        %v765 = vshrl.u32 2131351028, %v759
        %v766 = vor.u32 %v764, %v765
        %v767 = vshll.u32 2131351028, %v758
        %v768 = vshrl.u32 2102212464, %v759
        %v769 = vor.u32 %v767, %v768
        %v770 = vshll.u32 2102212464, %v758
        %v771 = vshrl.u32 920167782, %v759
        %v772 = vor.u32 %v770, %v771
        %v773 = vshll.u32 920167782, %v758
        %v774 = vshrl.u32 1326507024, %v759
        %v775 = vor.u32 %v773, %v774
        %vm776 = vcmp.lt.s32.totalorder %v757, 1
        %vm777 = vcmp.lt.s32.totalorder %v757, 2
        %vm778 = vcmp.lt.s32.totalorder %v757, 3
        %vm779 = vcmp.lt.s32.totalorder %v757, 4
        %v780 = vsel %vm776, %v760, %v763
        %v781 = vsel %vm779, %v769, 2102212464
        %v782 = vsel %vm778, %v766, %v781
        %v783 = vsel %vm777, %v780, %v782
        %v784 = vsel %vm776, %v763, %v766
        %v785 = vsel %vm779, %v772, 920167782
        %v786 = vsel %vm778, %v769, %v785
        %v787 = vsel %vm777, %v784, %v786
        %v788 = vsel %vm776, %v766, %v769
        %v789 = vsel %vm779, %v775, 1326507024
        %v790 = vsel %vm778, %v772, %v789
        %v791 = vsel %vm777, %v788, %v790
        %v792 = vshll.u32 %v752, 8
        %v793 = vmul.u32.u64.compose %v792, %v791
        %v794 = vextract.low.u32 %v793
        %v795 = vextract.high.u32 %v793
        %v796 = vmul.u32.u64.compose %v792, %v787
        %v797 = vextract.low.u32 %v796
        %v798 = vextract.high.u32 %v796
        %v799 = vmul.u32 %v792, %v783
        %v800 = vadd.s32 %v795, %v797
        %vm801 = vc.u32 %v795, %v797
        %v802 = vadd.s32 %v798, 1
        %v803 = vsel %vm801, %v802, %v798
        %v804 = vadd.s32 %v799, %v803
        %v805 = vadd.s32 %v804, 536870912
        %v806 = vshrl.u32 %v805, 30
        %v807 = vshll.u32 %v806, 30
        %v808 = vsub.s32 %v804, %v807
        %vm809 = vcmp.lt.s32.totalorder %v808, 0
        %v810 = vsub.s32 0, %v808
        %v811 = vsel %vm809, %v810, %v808
        %v812 = vclz %v811
        %v813 = vsub.s32 %v812, 2
        %vm814 = vcmp.gt.s32.totalorder 0, %v813
        %v815 = vsel %vm814, 0, %v813
        %v816 = vsub.s32 32, %v815
        %v817 = vshll.u32 %v808, %v815
        %v818 = vshrl.u32 %v800, %v816
        %v819 = vor.u32 %v817, %v818
        %v820 = vsub.s32 4294967266, %v815
        %v821 = vadd.s32 %v820, 127
        %v822 = vshll.u32 %v821, 23
        %v823 = vor.u32 4788187, %v822
        %v824 = vand.u32 2147483647, %v823
        %v826 = vcvt.s32.f32 %v819
        %v827 = vmul.f32 %v826, %v824
        %v828 = vxor.u32 %v827, 2147483648
        %v829 = vsel %vm746, %v828, %v827
        %v830 = vsub.s32 4, %v806
        %v831 = vsel %vm746, %v830, %v806
        %v832 = vsel %vm745, %v318, %v829
        %v833 = vsel %vm745, 0, %v831
        %v834 = vcosq.f32.pop %v832
        %v835 = vsinq.f32.pop %v832
        %vm836 = vweird.f32 %v318
        %v837 = vadd.s32 %v833, 3
        %v838 = vand.u32 %v837, 3
        %vm839 = vcmp.lt.s32.totalorder %v838, 2
        %vm840 = vcmp.eq.s32.totalorder %v838, 0
        %v841 = vxor.u32 %v835, 2147483648
        %v842 = vsel %vm840, %v834, %v841
        %vm843 = vcmp.eq.s32.totalorder %v838, 2
        %v844 = vxor.u32 %v834, 2147483648
        %v845 = vsel %vm843, %v844, %v835
        %v846 = vsel %vm839, %v842, %v845
        %v847 = vsel %vm836, nan, %v846
        %v848 = vand.u32 2147483647, %v320
        %vm849 = vcmp.le.f32.partialorder %v848, 0.7853982
        %vm850 = vcmp.lt.s32.totalorder %v320, 0
        %v851 = vand.u32 %v320, 2139095040
        %v852 = vshrl.u32 %v851, 23
        %v853 = vsub.s32 %v852, 127
        %v854 = vand.u32 2147483647, %v320
        %v855 = vand.u32 %v854, 8388607
        %v856 = vor.u32 %v855, 8388608
        %v857 = vsub.s32 0, %v856
        %v858 = vadd.s32 %v853, 1
        %vm859 = vcmp.gt.s32.totalorder %v858, 0
        %v860 = vsel %vm859, %v858, 0
        %v861 = vshrl.u32 %v860, 5
        %v862 = vand.u32 %v860, 31
        %v863 = vsub.s32 32, %v862
        %v864 = vshrl.u32 683565275, %v863
        %v865 = vshll.u32 683565275, %v862
        %v866 = vshrl.u32 2475754826, %v863
        %v867 = vor.u32 %v865, %v866
        %v868 = vshll.u32 2475754826, %v862
        %v869 = vshrl.u32 2131351028, %v863
        %v870 = vor.u32 %v868, %v869
        %v871 = vshll.u32 2131351028, %v862
        %v872 = vshrl.u32 2102212464, %v863
        %v873 = vor.u32 %v871, %v872
        %v874 = vshll.u32 2102212464, %v862
        %v875 = vshrl.u32 920167782, %v863
        %v876 = vor.u32 %v874, %v875
        %v877 = vshll.u32 920167782, %v862
        %v878 = vshrl.u32 1326507024, %v863
        %v879 = vor.u32 %v877, %v878
        %vm880 = vcmp.lt.s32.totalorder %v861, 1
        %vm881 = vcmp.lt.s32.totalorder %v861, 2
        %vm882 = vcmp.lt.s32.totalorder %v861, 3
        %vm883 = vcmp.lt.s32.totalorder %v861, 4
        %v884 = vsel %vm880, %v864, %v867
        %v885 = vsel %vm883, %v873, 2102212464
        %v886 = vsel %vm882, %v870, %v885
        %v887 = vsel %vm881, %v884, %v886
        %v888 = vsel %vm880, %v867, %v870
        %v889 = vsel %vm883, %v876, 920167782
        %v890 = vsel %vm882, %v873, %v889
        %v891 = vsel %vm881, %v888, %v890
        %v892 = vsel %vm880, %v870, %v873
        %v893 = vsel %vm883, %v879, 1326507024
        %v894 = vsel %vm882, %v876, %v893
        %v895 = vsel %vm881, %v892, %v894
        %v896 = vshll.u32 %v856, 8
        %v897 = vmul.u32.u64.compose %v896, %v895
        %v898 = vextract.low.u32 %v897
        %v899 = vextract.high.u32 %v897
        %v900 = vmul.u32.u64.compose %v896, %v891
        %v901 = vextract.low.u32 %v900
        %v902 = vextract.high.u32 %v900
        %v903 = vmul.u32 %v896, %v887
        %v904 = vadd.s32 %v899, %v901
        %vm905 = vc.u32 %v899, %v901
        %v906 = vadd.s32 %v902, 1
        %v907 = vsel %vm905, %v906, %v902
        %v908 = vadd.s32 %v903, %v907
        %v909 = vadd.s32 %v908, 536870912
        %v910 = vshrl.u32 %v909, 30
        %v911 = vshll.u32 %v910, 30
        %v912 = vsub.s32 %v908, %v911
        %vm913 = vcmp.lt.s32.totalorder %v912, 0
        %v914 = vsub.s32 0, %v912
        %v915 = vsel %vm913, %v914, %v912
        %v916 = vclz %v915
        %v917 = vsub.s32 %v916, 2
        %vm918 = vcmp.gt.s32.totalorder 0, %v917
        %v919 = vsel %vm918, 0, %v917
        %v920 = vsub.s32 32, %v919
        %v921 = vshll.u32 %v912, %v919
        %v922 = vshrl.u32 %v904, %v920
        %v923 = vor.u32 %v921, %v922
        %v924 = vsub.s32 4294967266, %v919
        %v925 = vadd.s32 %v924, 127
        %v926 = vshll.u32 %v925, 23
        %v927 = vor.u32 4788187, %v926
        %v928 = vand.u32 2147483647, %v927
        %v930 = vcvt.s32.f32 %v923
        %v931 = vmul.f32 %v930, %v928
        %v932 = vxor.u32 %v931, 2147483648
        %v933 = vsel %vm850, %v932, %v931
        %v934 = vsub.s32 4, %v910
        %v935 = vsel %vm850, %v934, %v910
        %v936 = vsel %vm849, %v320, %v933
        %v937 = vsel %vm849, 0, %v935
        %v938 = vcosq.f32.pop %v936
        %v939 = vsinq.f32.pop %v936
        %vm940 = vweird.f32 %v320
        %v941 = vadd.s32 %v937, 3
        %v942 = vand.u32 %v941, 3
        %vm943 = vcmp.lt.s32.totalorder %v942, 2
        %vm944 = vcmp.eq.s32.totalorder %v942, 0
        %v945 = vxor.u32 %v939, 2147483648
        %v946 = vsel %vm944, %v938, %v945
        %vm947 = vcmp.eq.s32.totalorder %v942, 2
        %v948 = vxor.u32 %v938, 2147483648
        %v949 = vsel %vm947, %v948, %v939
        %v950 = vsel %vm943, %v946, %v949
        %v951 = vsel %vm940, nan, %v950
        %v952 = vand.u32 2147483647, %v324
        %vm953 = vcmp.le.f32.partialorder %v952, 0.7853982
        %vm954 = vcmp.lt.s32.totalorder %v324, 0
        %v955 = vand.u32 %v324, 2139095040
        %v956 = vshrl.u32 %v955, 23
        %v957 = vsub.s32 %v956, 127
        %v958 = vand.u32 2147483647, %v324
        %v959 = vand.u32 %v958, 8388607
        %v960 = vor.u32 %v959, 8388608
        %v961 = vsub.s32 0, %v960
        %v962 = vadd.s32 %v957, 1
        %vm963 = vcmp.gt.s32.totalorder %v962, 0
        %v964 = vsel %vm963, %v962, 0
        %v965 = vshrl.u32 %v964, 5
        %v966 = vand.u32 %v964, 31
        %v967 = vsub.s32 32, %v966
        %v968 = vshrl.u32 683565275, %v967
        %v969 = vshll.u32 683565275, %v966
        %v970 = vshrl.u32 2475754826, %v967
        %v971 = vor.u32 %v969, %v970
        %v972 = vshll.u32 2475754826, %v966
        %v973 = vshrl.u32 2131351028, %v967
        %v974 = vor.u32 %v972, %v973
        %v975 = vshll.u32 2131351028, %v966
        %v976 = vshrl.u32 2102212464, %v967
        %v977 = vor.u32 %v975, %v976
        %v978 = vshll.u32 2102212464, %v966
        %v979 = vshrl.u32 920167782, %v967
        %v980 = vor.u32 %v978, %v979
        %v981 = vshll.u32 920167782, %v966
        %v982 = vshrl.u32 1326507024, %v967
        %v983 = vor.u32 %v981, %v982
        %vm984 = vcmp.lt.s32.totalorder %v965, 1
        %vm985 = vcmp.lt.s32.totalorder %v965, 2
        %vm986 = vcmp.lt.s32.totalorder %v965, 3
        %vm987 = vcmp.lt.s32.totalorder %v965, 4
        %v988 = vsel %vm984, %v968, %v971
        %v989 = vsel %vm987, %v977, 2102212464
        %v990 = vsel %vm986, %v974, %v989
        %v991 = vsel %vm985, %v988, %v990
        %v992 = vsel %vm984, %v971, %v974
        %v993 = vsel %vm987, %v980, 920167782
        %v994 = vsel %vm986, %v977, %v993
        %v995 = vsel %vm985, %v992, %v994
        %v996 = vsel %vm984, %v974, %v977
        %v997 = vsel %vm987, %v983, 1326507024
        %v998 = vsel %vm986, %v980, %v997
        %v999 = vsel %vm985, %v996, %v998
        %v1000 = vshll.u32 %v960, 8
        %v1001 = vmul.u32.u64.compose %v1000, %v999
        %v1002 = vextract.low.u32 %v1001
        %v1003 = vextract.high.u32 %v1001
        %v1004 = vmul.u32.u64.compose %v1000, %v995
        %v1005 = vextract.low.u32 %v1004
        %v1006 = vextract.high.u32 %v1004
        %v1007 = vmul.u32 %v1000, %v991
        %v1008 = vadd.s32 %v1003, %v1005
        %vm1009 = vc.u32 %v1003, %v1005
        %v1010 = vadd.s32 %v1006, 1
        %v1011 = vsel %vm1009, %v1010, %v1006
        %v1012 = vadd.s32 %v1007, %v1011
        %v1013 = vadd.s32 %v1012, 536870912
        %v1014 = vshrl.u32 %v1013, 30
        %v1015 = vshll.u32 %v1014, 30
        %v1016 = vsub.s32 %v1012, %v1015
        %vm1017 = vcmp.lt.s32.totalorder %v1016, 0
        %v1018 = vsub.s32 0, %v1016
        %v1019 = vsel %vm1017, %v1018, %v1016
        %v1020 = vclz %v1019
        %v1021 = vsub.s32 %v1020, 2
        %vm1022 = vcmp.gt.s32.totalorder 0, %v1021
        %v1023 = vsel %vm1022, 0, %v1021
        %v1024 = vsub.s32 32, %v1023
        %v1025 = vshll.u32 %v1016, %v1023
        %v1026 = vshrl.u32 %v1008, %v1024
        %v1027 = vor.u32 %v1025, %v1026
        %v1028 = vsub.s32 4294967266, %v1023
        %v1029 = vadd.s32 %v1028, 127
        %v1030 = vshll.u32 %v1029, 23
        %v1031 = vor.u32 4788187, %v1030
        %v1032 = vand.u32 2147483647, %v1031
        %v1034 = vcvt.s32.f32 %v1027
        %v1035 = vmul.f32 %v1034, %v1032
        %v1036 = vxor.u32 %v1035, 2147483648
        %v1037 = vsel %vm954, %v1036, %v1035
        %v1038 = vsub.s32 4, %v1014
        %v1039 = vsel %vm954, %v1038, %v1014
        %v1040 = vsel %vm953, %v324, %v1037
        %v1041 = vsel %vm953, 0, %v1039
        %v1042 = vcosq.f32.pop %v1040
        %v1043 = vsinq.f32.pop %v1040
        %vm1044 = vweird.f32 %v324
        %v1045 = vadd.s32 %v1041, 3
        %v1046 = vand.u32 %v1045, 3
        %vm1047 = vcmp.lt.s32.totalorder %v1046, 2
        %vm1048 = vcmp.eq.s32.totalorder %v1046, 0
        %v1049 = vxor.u32 %v1043, 2147483648
        %v1050 = vsel %vm1048, %v1042, %v1049
        %vm1051 = vcmp.eq.s32.totalorder %v1046, 2
        %v1052 = vxor.u32 %v1042, 2147483648
        %v1053 = vsel %vm1051, %v1052, %v1043
        %v1054 = vsel %vm1047, %v1050, %v1053
        %v1055 = vsel %vm1044, nan, %v1054
        %v1056 = vand.u32 2147483647, %v326
        %vm1057 = vcmp.le.f32.partialorder %v1056, 0.7853982
        %vm1058 = vcmp.lt.s32.totalorder %v326, 0
        %v1059 = vand.u32 %v326, 2139095040
        %v1060 = vshrl.u32 %v1059, 23
        %v1061 = vsub.s32 %v1060, 127
        %v1062 = vand.u32 2147483647, %v326
        %v1063 = vand.u32 %v1062, 8388607
        %v1064 = vor.u32 %v1063, 8388608
        %v1065 = vsub.s32 0, %v1064
        %v1066 = vadd.s32 %v1061, 1
        %vm1067 = vcmp.gt.s32.totalorder %v1066, 0
        %v1068 = vsel %vm1067, %v1066, 0
        %v1069 = vshrl.u32 %v1068, 5
        %v1070 = vand.u32 %v1068, 31
        %v1071 = vsub.s32 32, %v1070
        %v1072 = vshrl.u32 683565275, %v1071
        %v1073 = vshll.u32 683565275, %v1070
        %v1074 = vshrl.u32 2475754826, %v1071
        %v1075 = vor.u32 %v1073, %v1074
        %v1076 = vshll.u32 2475754826, %v1070
        %v1077 = vshrl.u32 2131351028, %v1071
        %v1078 = vor.u32 %v1076, %v1077
        %v1079 = vshll.u32 2131351028, %v1070
        %v1080 = vshrl.u32 2102212464, %v1071
        %v1081 = vor.u32 %v1079, %v1080
        %v1082 = vshll.u32 2102212464, %v1070
        %v1083 = vshrl.u32 920167782, %v1071
        %v1084 = vor.u32 %v1082, %v1083
        %v1085 = vshll.u32 920167782, %v1070
        %v1086 = vshrl.u32 1326507024, %v1071
        %v1087 = vor.u32 %v1085, %v1086
        %vm1088 = vcmp.lt.s32.totalorder %v1069, 1
        %vm1089 = vcmp.lt.s32.totalorder %v1069, 2
        %vm1090 = vcmp.lt.s32.totalorder %v1069, 3
        %vm1091 = vcmp.lt.s32.totalorder %v1069, 4
        %v1092 = vsel %vm1088, %v1072, %v1075
        %v1093 = vsel %vm1091, %v1081, 2102212464
        %v1094 = vsel %vm1090, %v1078, %v1093
        %v1095 = vsel %vm1089, %v1092, %v1094
        %v1096 = vsel %vm1088, %v1075, %v1078
        %v1097 = vsel %vm1091, %v1084, 920167782
        %v1098 = vsel %vm1090, %v1081, %v1097
        %v1099 = vsel %vm1089, %v1096, %v1098
        %v1100 = vsel %vm1088, %v1078, %v1081
        %v1101 = vsel %vm1091, %v1087, 1326507024
        %v1102 = vsel %vm1090, %v1084, %v1101
        %v1103 = vsel %vm1089, %v1100, %v1102
        %v1104 = vshll.u32 %v1064, 8
        %v1105 = vmul.u32.u64.compose %v1104, %v1103
        %v1106 = vextract.low.u32 %v1105
        %v1107 = vextract.high.u32 %v1105
        %v1108 = vmul.u32.u64.compose %v1104, %v1099
        %v1109 = vextract.low.u32 %v1108
        %v1110 = vextract.high.u32 %v1108
        %v1111 = vmul.u32 %v1104, %v1095
        %v1112 = vadd.s32 %v1107, %v1109
        %vm1113 = vc.u32 %v1107, %v1109
        %v1114 = vadd.s32 %v1110, 1
        %v1115 = vsel %vm1113, %v1114, %v1110
        %v1116 = vadd.s32 %v1111, %v1115
        %v1117 = vadd.s32 %v1116, 536870912
        %v1118 = vshrl.u32 %v1117, 30
        %v1119 = vshll.u32 %v1118, 30
        %v1120 = vsub.s32 %v1116, %v1119
        %vm1121 = vcmp.lt.s32.totalorder %v1120, 0
        %v1122 = vsub.s32 0, %v1120
        %v1123 = vsel %vm1121, %v1122, %v1120
        %v1124 = vclz %v1123
        %v1125 = vsub.s32 %v1124, 2
        %vm1126 = vcmp.gt.s32.totalorder 0, %v1125
        %v1127 = vsel %vm1126, 0, %v1125
        %v1128 = vsub.s32 32, %v1127
        %v1129 = vshll.u32 %v1120, %v1127
        %v1130 = vshrl.u32 %v1112, %v1128
        %v1131 = vor.u32 %v1129, %v1130
        %v1132 = vsub.s32 4294967266, %v1127
        %v1133 = vadd.s32 %v1132, 127
        %v1134 = vshll.u32 %v1133, 23
        %v1135 = vor.u32 4788187, %v1134
        %v1136 = vand.u32 2147483647, %v1135
        %v1138 = vcvt.s32.f32 %v1131
        %v1139 = vmul.f32 %v1138, %v1136
        %v1140 = vxor.u32 %v1139, 2147483648
        %v1141 = vsel %vm1058, %v1140, %v1139
        %v1142 = vsub.s32 4, %v1118
        %v1143 = vsel %vm1058, %v1142, %v1118
        %v1144 = vsel %vm1057, %v326, %v1141
        %v1145 = vsel %vm1057, 0, %v1143
        %v1146 = vcosq.f32.pop %v1144
        %v1147 = vsinq.f32.pop %v1144
        %vm1148 = vweird.f32 %v326
        %v1149 = vadd.s32 %v1145, 3
        %v1150 = vand.u32 %v1149, 3
        %vm1151 = vcmp.lt.s32.totalorder %v1150, 2
        %vm1152 = vcmp.eq.s32.totalorder %v1150, 0
        %v1153 = vxor.u32 %v1147, 2147483648
        %v1154 = vsel %vm1152, %v1146, %v1153
        %vm1155 = vcmp.eq.s32.totalorder %v1150, 2
        %v1156 = vxor.u32 %v1146, 2147483648
        %v1157 = vsel %vm1155, %v1156, %v1147
        %v1158 = vsel %vm1151, %v1154, %v1157
        %v1159 = vsel %vm1148, nan, %v1158
        %1161 = vset.pattern.permute.xlu0 0
        %1162 = vperm.xlu0 %1161, %v189
        %v1163 = vpop.permute.xlu0 %1162
        %1166 = vset.pattern.permute.xlu0 0
        %1167 = vperm.xlu0 %1166, %v190
        %v1168 = vpop.permute.xlu0 %1167
        %1171 = vset.pattern.permute.xlu0 0
        %1172 = vperm.xlu0 %1171, %v191
        %v1173 = vpop.permute.xlu0 %1172
        %1176 = vset.pattern.permute.xlu0 0
        %1177 = vperm.xlu0 %1176, %v192
        %v1178 = vpop.permute.xlu0 %1177
        %vm1180 = vcmask 261120
        %v1182 = vsel %vm1180, %v176, 0
        %v1185 = vsel %vm1180, %v177, 0
        %v1188 = vsel %vm1180, %v178, 0
        %v1191 = vsel %vm1180, %v179, 0
        %1193 = vmatprep.subr.mxu0 %v535
        %1194 = vmatpush1.msra.mxu0 %v431
        %1195 = vmatprep.subr.mxu0 %v743
        %1196 = vmatpush1.msra.mxu0 %v639
        %1197 = vmatprep.subr.mxu0 %v951
        %1198 = vmatpush1.msra.mxu0 %v847
        %1199 = vmatprep.subr.mxu0 %v1159
        %1200 = vmatpush1.msra.mxu0 %v1055
        %1201 = vmatprep.subr.mxu0 0.0
        %1202 = vmatpush1.msra.mxu0 0.0
        %1203 = vmatprep.subr.mxu0 0.0
        %1204 = vmatpush1.msra.mxu0 0.0
        %1205 = vmatprep.subr.mxu0 0.0
        %1206 = vmatpush1.msra.mxu0 0.0
        %1207 = vmatprep.subr.mxu0 0.0
        %1208 = vmatpush1.msra.mxu0 0.0
        %1209 = vmatprep.subr.mxu0 0.0
        %1210 = vmatpush1.msra.mxu0 0.0
        %1211 = vmatprep.subr.mxu0 0.0
        %1212 = vmatpush1.msra.mxu0 0.0
        %1213 = vmatprep.subr.mxu0 0.0
        %1214 = vmatpush1.msra.mxu0 0.0
        %1215 = vmatprep.subr.mxu0 0.0
        %1216 = vmatpush1.msra.mxu0 0.0
        %1217 = vmatprep.subr.mxu0 0.0
        %1218 = vmatpush1.msra.mxu0 0.0
        %1219 = vmatprep.subr.mxu0 0.0
        %1220 = vmatpush1.msra.mxu0 0.0
        %1221 = vmatprep.subr.mxu0 0.0
        %1222 = vmatpush1.msra.mxu0 0.0
        %1223 = vmatprep.subr.mxu0 0.0
        %1224 = vmatpush1.msra.mxu0 0.0
        %1225 = vmatprep.subr.mxu0 0.0
        %1226 = vmatpush1.msra.mxu0 0.0
        %1227 = vmatprep.subr.mxu0 0.0
        %1228 = vmatpush1.msra.mxu0 0.0
        %1229 = vmatprep.subr.mxu0 0.0
        %1230 = vmatpush1.msra.mxu0 0.0
        %1231 = vmatprep.subr.mxu0 0.0
        %1232 = vmatpush1.msra.mxu0 0.0
        %1233 = vmatprep.subr.mxu0 0.0
        %1234 = vmatpush1.msra.mxu0 0.0
        %1235 = vmatprep.subr.mxu0 0.0
        %1236 = vmatpush1.msra.mxu0 0.0
        %1237 = vmatprep.subr.mxu0 0.0
        %1238 = vmatpush1.msra.mxu0 0.0
        %1239 = vmatprep.subr.mxu0 0.0
        %1240 = vmatpush1.msra.mxu0 0.0
        %1241 = vmatprep.subr.mxu0 0.0
        %1242 = vmatpush1.msra.mxu0 0.0
        %1243 = vmatprep.subr.mxu0 0.0
        %1244 = vmatpush1.msra.mxu0 0.0
        %1245 = vmatprep.subr.mxu0 0.0
        %1246 = vmatpush1.msra.mxu0 0.0
        %1247 = vmatprep.subr.mxu0 0.0
        %1248 = vmatpush1.msra.mxu0 0.0
        %1249 = vmatprep.subr.mxu0 0.0
        %1250 = vmatpush1.msra.mxu0 0.0
        %1251 = vmatprep.subr.mxu0 0.0
        %1252 = vmatpush1.msra.mxu0 0.0
        %1253 = vmatprep.subr.mxu0 0.0
        %1254 = vmatpush1.msra.mxu0 0.0
        %1255 = vmatprep.subr.mxu0 0.0
        %1256 = vmatpush1.msra.mxu0 0.0
        %1257 = vmatprep.mubr.f32.mxu0 0.0
        %1258 = vmatmul.mubr.f32.gmra.mrb[0].mxu0 %v1182
        %v1259 = vpop.f32.mrb[0].mxu0
        %v1260 = vadd.f32 %v1163, %v1259
        %v1261 = vpop.f32.mrb[0].mxu0
        %v1262 = vadd.f32 %v1163, %v1261
        %1263 = vmatprep.mubr.f32.mxu0 0.0
        %1264 = vmatmul.mubr.f32.gmra.mrb[0].mxu0 %v1185
        %v1265 = vpop.f32.mrb[0].mxu0
        %v1266 = vadd.f32 %v1168, %v1265
        %v1267 = vpop.f32.mrb[0].mxu0
        %v1268 = vadd.f32 %v1168, %v1267
        %1269 = vmatprep.mubr.f32.mxu0 0.0
        %1270 = vmatmul.mubr.f32.gmra.mrb[0].mxu0 %v1188
        %v1271 = vpop.f32.mrb[0].mxu0
        %v1272 = vadd.f32 %v1173, %v1271
        %v1273 = vpop.f32.mrb[0].mxu0
        %v1274 = vadd.f32 %v1173, %v1273
        %1275 = vmatprep.mubr.f32.mxu0 0.0
        %1276 = vmatmul.mubr.f32.gmra.mrb[0].mxu0 %v1191
        %v1277 = vpop.f32.mrb[0].mxu0
        %v1278 = vadd.f32 %v1178, %v1277
        %v1279 = vpop.f32.mrb[0].mxu0
        %v1280 = vadd.f32 %v1178, %v1279
        %1281 = vdwg.mxu0
        %v1282 = vtanh.pop %v1260
        %v1283 = vtanh.pop %v1262
        %v1284 = vtanh.pop %v1266
        %v1285 = vtanh.pop %v1268
        %v1286 = vtanh.pop %v1272
        %v1287 = vtanh.pop %v1274
        %v1288 = vtanh.pop %v1278
        %v1289 = vtanh.pop %v1280
        %1291 = vset.pattern.permute.xlu0 0
        %1292 = vperm.xlu0 %1291, %v193
        %v1293 = vpop.permute.xlu0 %1292
        %1296 = vset.pattern.permute.xlu0 0
        %1297 = vperm.xlu0 %1296, %v194
        %v1298 = vpop.permute.xlu0 %1297
        %1301 = vset.pattern.permute.xlu0 0
        %1302 = vperm.xlu0 %1301, %v195
        %v1303 = vpop.permute.xlu0 %1302
        %1306 = vset.pattern.permute.xlu0 0
        %1307 = vperm.xlu0 %1306, %v196
        %v1308 = vpop.permute.xlu0 %1307
        %v1311 = vsel %vm1180, %v180, 0
        %v1314 = vsel %vm1180, %v181, 0
        %v1317 = vsel %vm1180, %v182, 0
        %v1320 = vsel %vm1180, %v183, 0
        %1322 = vmatprep.subr.mxu0 %v1283
        %1323 = vmatpush1.msra.mxu0 %v1282
        %1324 = vmatprep.subr.mxu0 %v1285
        %1325 = vmatpush1.msra.mxu0 %v1284
        %1326 = vmatprep.subr.mxu0 %v1287
        %1327 = vmatpush1.msra.mxu0 %v1286
        %1328 = vmatprep.subr.mxu0 %v1289
        %1329 = vmatpush1.msra.mxu0 %v1288
        %1330 = vmatprep.subr.mxu0 0.0
        %1331 = vmatpush1.msra.mxu0 0.0
        %1332 = vmatprep.subr.mxu0 0.0
        %1333 = vmatpush1.msra.mxu0 0.0
        %1334 = vmatprep.subr.mxu0 0.0
        %1335 = vmatpush1.msra.mxu0 0.0
        %1336 = vmatprep.subr.mxu0 0.0
        %1337 = vmatpush1.msra.mxu0 0.0
        %1338 = vmatprep.subr.mxu0 0.0
        %1339 = vmatpush1.msra.mxu0 0.0
        %1340 = vmatprep.subr.mxu0 0.0
        %1341 = vmatpush1.msra.mxu0 0.0
        %1342 = vmatprep.subr.mxu0 0.0
        %1343 = vmatpush1.msra.mxu0 0.0
        %1344 = vmatprep.subr.mxu0 0.0
        %1345 = vmatpush1.msra.mxu0 0.0
        %1346 = vmatprep.subr.mxu0 0.0
        %1347 = vmatpush1.msra.mxu0 0.0
        %1348 = vmatprep.subr.mxu0 0.0
        %1349 = vmatpush1.msra.mxu0 0.0
        %1350 = vmatprep.subr.mxu0 0.0
        %1351 = vmatpush1.msra.mxu0 0.0
        %1352 = vmatprep.subr.mxu0 0.0
        %1353 = vmatpush1.msra.mxu0 0.0
        %1354 = vmatprep.subr.mxu0 0.0
        %1355 = vmatpush1.msra.mxu0 0.0
        %1356 = vmatprep.subr.mxu0 0.0
        %1357 = vmatpush1.msra.mxu0 0.0
        %1358 = vmatprep.subr.mxu0 0.0
        %1359 = vmatpush1.msra.mxu0 0.0
        %1360 = vmatprep.subr.mxu0 0.0
        %1361 = vmatpush1.msra.mxu0 0.0
        %1362 = vmatprep.subr.mxu0 0.0
        %1363 = vmatpush1.msra.mxu0 0.0
        %1364 = vmatprep.subr.mxu0 0.0
        %1365 = vmatpush1.msra.mxu0 0.0
        %1366 = vmatprep.subr.mxu0 0.0
        %1367 = vmatpush1.msra.mxu0 0.0
        %1368 = vmatprep.subr.mxu0 0.0
        %1369 = vmatpush1.msra.mxu0 0.0
        %1370 = vmatprep.subr.mxu0 0.0
        %1371 = vmatpush1.msra.mxu0 0.0
        %1372 = vmatprep.subr.mxu0 0.0
        %1373 = vmatpush1.msra.mxu0 0.0
        %1374 = vmatprep.subr.mxu0 0.0
        %1375 = vmatpush1.msra.mxu0 0.0
        %1376 = vmatprep.subr.mxu0 0.0
        %1377 = vmatpush1.msra.mxu0 0.0
        %1378 = vmatprep.subr.mxu0 0.0
        %1379 = vmatpush1.msra.mxu0 0.0
        %1380 = vmatprep.subr.mxu0 0.0
        %1381 = vmatpush1.msra.mxu0 0.0
        %1382 = vmatprep.subr.mxu0 0.0
        %1383 = vmatpush1.msra.mxu0 0.0
        %1384 = vmatprep.subr.mxu0 0.0
        %1385 = vmatpush1.msra.mxu0 0.0
        %1386 = vmatprep.mubr.f32.mxu0 0.0
        %1387 = vmatmul.mubr.f32.gmra.mrb[0].mxu0 %v1311
        %v1388 = vpop.f32.mrb[0].mxu0
        %v1389 = vadd.f32 %v1293, %v1388
        %v1390 = vpop.f32.mrb[0].mxu0
        %v1391 = vadd.f32 %v1293, %v1390
        %1392 = vmatprep.mubr.f32.mxu0 0.0
        %1393 = vmatmul.mubr.f32.gmra.mrb[0].mxu0 %v1314
        %v1394 = vpop.f32.mrb[0].mxu0
        %v1395 = vadd.f32 %v1298, %v1394
        %v1396 = vpop.f32.mrb[0].mxu0
        %v1397 = vadd.f32 %v1298, %v1396
        %1398 = vmatprep.mubr.f32.mxu0 0.0
        %1399 = vmatmul.mubr.f32.gmra.mrb[0].mxu0 %v1317
        %v1400 = vpop.f32.mrb[0].mxu0
        %v1401 = vadd.f32 %v1303, %v1400
        %v1402 = vpop.f32.mrb[0].mxu0
        %v1403 = vadd.f32 %v1303, %v1402
        %1404 = vmatprep.mubr.f32.mxu0 0.0
        %1405 = vmatmul.mubr.f32.gmra.mrb[0].mxu0 %v1320
        %v1406 = vpop.f32.mrb[0].mxu0
        %v1407 = vadd.f32 %v1308, %v1406
        %v1408 = vpop.f32.mrb[0].mxu0
        %v1409 = vadd.f32 %v1308, %v1408
        %1410 = vdwg.mxu0
        %v1411 = vtanh.pop %v1389
        %v1412 = vtanh.pop %v1391
        %v1413 = vtanh.pop %v1395
        %v1414 = vtanh.pop %v1397
        %v1415 = vtanh.pop %v1401
        %v1416 = vtanh.pop %v1403
        %v1417 = vtanh.pop %v1407
        %v1418 = vtanh.pop %v1409
        %1420 = vset.pattern.permute.xlu0 0
        %1421 = vperm.xlu0 %1420, %v197
        %v1422 = vpop.permute.xlu0 %1421
        %v1425 = vsel %vm1180, %v184, 0
        %1427 = vmatprep.subr.mxu0 %v1412
        %1428 = vmatpush1.msra.mxu0 %v1411
        %1429 = vmatprep.subr.mxu0 %v1414
        %1430 = vmatpush1.msra.mxu0 %v1413
        %1431 = vmatprep.subr.mxu0 %v1416
        %1432 = vmatpush1.msra.mxu0 %v1415
        %1433 = vmatprep.subr.mxu0 %v1418
        %1434 = vmatpush1.msra.mxu0 %v1417
        %1435 = vmatprep.subr.mxu0 0.0
        %1436 = vmatpush1.msra.mxu0 0.0
        %1437 = vmatprep.subr.mxu0 0.0
        %1438 = vmatpush1.msra.mxu0 0.0
        %1439 = vmatprep.subr.mxu0 0.0
        %1440 = vmatpush1.msra.mxu0 0.0
        %1441 = vmatprep.subr.mxu0 0.0
        %1442 = vmatpush1.msra.mxu0 0.0
        %1443 = vmatprep.subr.mxu0 0.0
        %1444 = vmatpush1.msra.mxu0 0.0
        %1445 = vmatprep.subr.mxu0 0.0
        %1446 = vmatpush1.msra.mxu0 0.0
        %1447 = vmatprep.subr.mxu0 0.0
        %1448 = vmatpush1.msra.mxu0 0.0
        %1449 = vmatprep.subr.mxu0 0.0
        %1450 = vmatpush1.msra.mxu0 0.0
        %1451 = vmatprep.subr.mxu0 0.0
        %1452 = vmatpush1.msra.mxu0 0.0
        %1453 = vmatprep.subr.mxu0 0.0
        %1454 = vmatpush1.msra.mxu0 0.0
        %1455 = vmatprep.subr.mxu0 0.0
        %1456 = vmatpush1.msra.mxu0 0.0
        %1457 = vmatprep.subr.mxu0 0.0
        %1458 = vmatpush1.msra.mxu0 0.0
        %1459 = vmatprep.subr.mxu0 0.0
        %1460 = vmatpush1.msra.mxu0 0.0
        %1461 = vmatprep.subr.mxu0 0.0
        %1462 = vmatpush1.msra.mxu0 0.0
        %1463 = vmatprep.subr.mxu0 0.0
        %1464 = vmatpush1.msra.mxu0 0.0
        %1465 = vmatprep.subr.mxu0 0.0
        %1466 = vmatpush1.msra.mxu0 0.0
        %1467 = vmatprep.subr.mxu0 0.0
        %1468 = vmatpush1.msra.mxu0 0.0
        %1469 = vmatprep.subr.mxu0 0.0
        %1470 = vmatpush1.msra.mxu0 0.0
        %1471 = vmatprep.subr.mxu0 0.0
        %1472 = vmatpush1.msra.mxu0 0.0
        %1473 = vmatprep.subr.mxu0 0.0
        %1474 = vmatpush1.msra.mxu0 0.0
        %1475 = vmatprep.subr.mxu0 0.0
        %1476 = vmatpush1.msra.mxu0 0.0
        %1477 = vmatprep.subr.mxu0 0.0
        %1478 = vmatpush1.msra.mxu0 0.0
        %1479 = vmatprep.subr.mxu0 0.0
        %1480 = vmatpush1.msra.mxu0 0.0
        %1481 = vmatprep.subr.mxu0 0.0
        %1482 = vmatpush1.msra.mxu0 0.0
        %1483 = vmatprep.subr.mxu0 0.0
        %1484 = vmatpush1.msra.mxu0 0.0
        %1485 = vmatprep.subr.mxu0 0.0
        %1486 = vmatpush1.msra.mxu0 0.0
        %1487 = vmatprep.subr.mxu0 0.0
        %1488 = vmatpush1.msra.mxu0 0.0
        %1489 = vmatprep.subr.mxu0 0.0
        %1490 = vmatpush1.msra.mxu0 0.0
        %1491 = vmatprep.mubr.f32.mxu0 0.0
        %1492 = vmatmul.mubr.f32.gmra.mrb[0].mxu0 %v1425
        %v1493 = vpop.f32.mrb[0].mxu0
        %v1494 = vadd.f32 %v1422, %v1493
        %v1495 = vpop.f32.mrb[0].mxu0
        %v1496 = vadd.f32 %v1422, %v1495
        %1497 = vdwg.mxu0
        %1498 = vst [vmem:[%s164] sm:$0xff] %v1494
        %1499 = vst [vmem:[%s164 + $0x8] sm:$0xff] %v1496
        %s1500 = sand.u32 %s93, 1
        %s1501 = scalar_lea.sflag [#allocation3], %s1500
        %s1502 = sand.u32 %s93, 1
        %s1503 = smul.addr %s1502, 16
        %s1504 = scalar_lea.vmem [#allocation2], %s1503
        // Predicated region
        $region33: #{tpu_custom_call.1} parent=31 // pred_check
          %p1505 = pneg %p103
        $region34: #{tpu_custom_call.1} parent=31 // pred_check_branch
          %1507 = sbr.rel (%p1505) target = $region36
        $region35: #{tpu_custom_call.1} parent=31 // pred_region
          %s1508 = smul.u32 2, %s17
          %s1510 = ssub.s32 256, 256
          %1511 = vsyncadd %s1501, %s1510
          %s1512 = smul.addr %s1508, 128
          %s1513 = scalar_lea.hbm %s3, %s1512
          %s1515 = sshll.u32 %s1504, 4
          %s1516 = int_to_ptr.vmem [resolvable:$true] %s1515
          %1518 = dma.vmem_to_hbm [thread:$0]  %s1516, 256, %s1513, %s1501
        $region36: #{tpu_custom_call.1} parent=31 // pred_fallthru
          _
      $region32: #{tpu_custom_call.1} parent=5 // pred_fallthru
        _
      %p1519 = scmp.le.s32.totalorder 2, %s12
      // Predicated region
      $region37: #{tpu_custom_call.1} parent=5 // pred_check
        %p1520 = pneg %p1519
      $region38: #{tpu_custom_call.1} parent=5 // pred_check_branch
        %1522 = sbr.rel (%p1520) target = $region40
      $region39: #{tpu_custom_call.1} parent=5 // pred_region
        %s1523 = ssub.s32 %s12, 2
        // Predicated region
        $region41: #{tpu_custom_call.1} parent=39 // pred_check
          %p1524 = pneg %p109
        $region42: #{tpu_custom_call.1} parent=39 // pred_check_branch
          %1526 = sbr.rel (%p1524) target = $region44
        $region43: #{tpu_custom_call.1} parent=39 // pred_region
          %s1527 = sand.u32 %s94, 1
          %s1528 = scalar_lea.sflag [#allocation3], %s1527
          %s1529 = sand.u32 %s94, 1
          %s1530 = smul.addr %s1529, 16
          %s1531 = scalar_lea.vmem [#allocation2], %s1530
          %1532 = dma.done %s1528, 256
        $region44: #{tpu_custom_call.1} parent=39 // pred_fallthru
          _
      $region40: #{tpu_custom_call.1} parent=5 // pred_fallthru
        _
    $region6: #{tpu_custom_call.1} parent=1 // loop_footer
      %s16 = sadd.s32 1, %s12
    $region7: #{tpu_custom_call.1} parent=1 // loop_footer_branch
      %11 = sbr.rel target = $region3
    $region8: #{tpu_custom_call.1} parent=1 // loop_exit
      _
    %1533 = vsyncpa [#allocation3], 1
    %s1534 = scalar_lea.sflag [#allocation3], 1
    %1535 = vsyncpa %s1534, 1

</llo_original>
